<compile_context>
chip_gen: v6e
topology: v6e:2x2x1
jax: 0.10.0
libtpu: 0.0.40
codegen_flags: <defaults>
</compile_context>

<pallas_src>
import jax
import jax.numpy as jnp
from jax.experimental import pallas as pl
from jax.experimental.pallas import tpu as pltpu


def _motion_kernel(x_ref, tw_ref, sw_ref, o_ref):
    # x_ref : [BB, KT, C, H, W]  (VMEM) - only the frames used by the middle tap
    # tw_ref: [KT, C]            (SMEM) - temporal conv weights
    # sw_ref: [5, 5]             (SMEM) - spatial conv weights
    # o_ref : [BB, H, W]         (VMEM) - output block
    BB, KT, C, H, W = x_ref.shape

    # ---- temporal conv at the middle index + channel reduction ----
    m = jnp.zeros((BB, H, W), jnp.float32)
    for k in range(KT):
        for c in range(C):
            m = m + tw_ref[k, c] * x_ref[:, k, c, :, :].astype(jnp.float32)

    # ---- ReLU ----
    m = jnp.maximum(m, 0.0)

    # ---- 5x5 spatial conv, zero padding = 2, entirely in-register ----
    zr = jnp.zeros((BB, 2, W), jnp.float32)
    zc = jnp.zeros((BB, H + 4, 2), jnp.float32)
    mp = jnp.concatenate(
        [zc, jnp.concatenate([zr, m, zr], axis=1), zc], axis=2)  # [BB, H+4, W+4]
    # Hoist the lane-direction (dx) shifts: 5 lane-offset slices instead of 25.
    cols = [mp[:, :, dx:dx + W] for dx in range(5)]              # [BB, H+4, W]
    acc = jnp.zeros((BB, H, W), jnp.float32)
    for dy in range(5):
        for dx in range(5):
            acc = acc + sw_ref[dy, dx] * cols[dx][:, dy:dy + H, :]

    # ---- sigmoid ----
    o_ref[...] = jax.nn.sigmoid(acc).astype(o_ref.dtype)


_VMEM_BLOCK_BUDGET = 4 * 1024 * 1024  # bytes per input block (Pallas double-buffers it)


@jax.jit
def motion_strength(frames, temp_w, spat_w):
    """frames: [B, T, C, H, W] f32 -> motion map [B, 1, H, W] f32 in [0, 1]."""
    B, T, C, H, W = frames.shape
    KT = temp_w.shape[0]
    pad_t = KT // 2
    t_mid = T // 2

    # Static valid-tap window: taps that land on Conv3d's temporal zero-padding
    # contribute nothing, so skip both their frames and their weights.
    k_valid = [k for k in range(KT) if 0 <= t_mid + k - pad_t < T]
    k_lo, k_hi = k_valid[0], k_valid[-1] + 1
    t_lo = t_mid + k_lo - pad_t
    t_hi = t_mid + (k_hi - 1) - pad_t + 1
    frames_used = frames[:, t_lo:t_hi]          # only these frames hit HBM->VMEM
    tw_used = temp_w[k_lo:k_hi]
    KT_eff = t_hi - t_lo

    # Fold as many batch elements per grid step as fit the per-block VMEM budget.
    BB = 1
    for cand in range(B, 0, -1):
        if B % cand == 0 and cand * KT_eff * C * H * W * 4 <= _VMEM_BLOCK_BUDGET:
            BB = cand
            break
    grid = (B // BB,)

    out = pl.pallas_call(
        _motion_kernel,
        out_shape=jax.ShapeDtypeStruct((B, H, W), jnp.float32),
        grid=grid,
        in_specs=[
            pl.BlockSpec((BB, KT_eff, C, H, W), lambda g: (g, 0, 0, 0, 0)),
            pl.BlockSpec(memory_space=pltpu.MemorySpace.SMEM),
            pl.BlockSpec(memory_space=pltpu.MemorySpace.SMEM),
        ],
        out_specs=pl.BlockSpec((BB, H, W), lambda g: (g, 0, 0)),
        compiler_params=pltpu.CompilerParams(
            dimension_semantics=("parallel",),
            vmem_limit_bytes=32 * 1024 * 1024),
    )(frames_used, tw_used, spat_w)
    # NOTE: for large H, W add an H-tiled grid axis with a 2-row halo; batch
    # folding + KT-frame slicing already keeps this block well under budget here.
    return out[:, None, :, :]


def motion_strength_reference(frames, temp_w, spat_w):
    """Pure-JAX reference mirroring the PyTorch forward."""
    B, T, C, H, W = frames.shape
    KT = temp_w.shape[0]
    pad_t = KT // 2
    t_mid = T // 2
    m = jnp.zeros((B, H, W), jnp.float32)
    for k in range(KT):
        ti = t_mid + k - pad_t
        if 0 <= ti < T:
            m = m + jnp.einsum('bchw,c->bhw', frames[:, ti], temp_w[k])
    m = jnp.maximum(m, 0.0)
    mp = jnp.pad(m, ((0, 0), (2, 2), (2, 2)))
    out = jnp.zeros((B, H, W), jnp.float32)
    for dy in range(5):
        for dx in range(5):
            out = out + spat_w[dy, dx] * mp[:, dy:dy + H, dx:dx + W]
    return jax.nn.sigmoid(out)[:, None, :, :]


def make_params(t_window=3, in_channels=3):
    """Deterministic init exactly as in MotionStrengthModule.__init__."""
    # temporal filter: weight[0, c, k, 0, 0] -> stored here as temp_w[k, c]
    tw = jnp.zeros((t_window, in_channels), jnp.float32)
    if t_window == 3:
        tw = tw.at[0, :].set(-1.0).at[1, :].set(0.0).at[2, :].set(1.0)
    elif t_window == 5:
        tw = (tw.at[0, :].set(-0.5).at[1, :].set(-0.5)
                .at[2, :].set(0.0).at[3, :].set(0.5).at[4, :].set(0.5))
    # spatial filter: constant 1/(5*5)
    sw = jnp.full((5, 5), 1.0 / 25.0, jnp.float32)
    return tw, sw


if __name__ == "__main__":
    B, T, C, H, W = 2, 5, 3, 16, 16
    key = jax.random.PRNGKey(0)
    frames = jax.random.normal(key, (B, T, C, H, W), dtype=jnp.float32)
    temp_w, spat_w = make_params(t_window=3, in_channels=C)

    out = motion_strength(frames, temp_w, spat_w)
    out = jax.block_until_ready(out)

    ref = motion_strength_reference(frames, temp_w, spat_w)
    assert out.shape == (B, 1, H, W), out.shape
    assert jnp.allclose(out, ref, atol=1e-5, rtol=1e-5), \
        float(jnp.max(jnp.abs(out - ref)))

    print("KERNEL_OK")
</pallas_src>

<mosaic_0001>
module attributes {stable_mosaic.version = 11 : i64} {
  func.func @_motion_kernel(%arg0: i32, %arg1: memref<2x3x3x16x16xf32, #tpu.memory_space<vmem>>, %arg2: memref<3x3xf32, #tpu.memory_space<smem>>, %arg3: memref<5x5xf32, #tpu.memory_space<smem>>, %arg4: memref<2x16x16xf32, #tpu.memory_space<vmem>>) attributes {dimension_semantics = [#tpu.dimension_semantics<parallel>], iteration_bounds = array<i64: 1>, scalar_prefetch = 0 : i64, scratch_operands = 0 : i64, tpu.core_type = #tpu.core_type<tc>, window_params = [{transform_indices = @transform_0, window_bounds = array<i64: 2, 3, 3, 16, 16>}, {transform_indices = @transform_1, window_bounds = array<i64: 3, 3>}, {transform_indices = @transform_2, window_bounds = array<i64: 5, 5>}, {transform_indices = @transform_3, window_bounds = array<i64: 2, 16, 16>}]} {
    %cst = arith.constant 0.000000e+00 : f32
    %0 = vector.broadcast %cst : f32 to vector<2x16x16xf32>
    %c0 = arith.constant 0 : index
    %c0_0 = arith.constant 0 : index
    %1 = memref.load %arg2[%c0, %c0_0] : memref<3x3xf32, #tpu.memory_space<smem>>
    %c0_1 = arith.constant 0 : index
    %c0_2 = arith.constant 0 : index
    %c0_3 = arith.constant 0 : index
    %c0_4 = arith.constant 0 : index
    %c0_5 = arith.constant 0 : index
    %2 = vector.load %arg1[%c0_1, %c0_2, %c0_3, %c0_4, %c0_5] : memref<2x3x3x16x16xf32, #tpu.memory_space<vmem>>, vector<2x1x1x16x16xf32>
    %3 = vector.shape_cast %2 : vector<2x1x1x16x16xf32> to vector<2x16x16xf32>
    %4 = vector.broadcast %1 : f32 to vector<2x16x16xf32>
    %5 = arith.mulf %4, %3 : vector<2x16x16xf32>
    %6 = arith.addf %0, %5 : vector<2x16x16xf32>
    %c0_6 = arith.constant 0 : index
    %c1 = arith.constant 1 : index
    %7 = memref.load %arg2[%c0_6, %c1] : memref<3x3xf32, #tpu.memory_space<smem>>
    %c0_7 = arith.constant 0 : index
    %c0_8 = arith.constant 0 : index
    %c1_9 = arith.constant 1 : index
    %c0_10 = arith.constant 0 : index
    %c0_11 = arith.constant 0 : index
    %8 = vector.load %arg1[%c0_7, %c0_8, %c1_9, %c0_10, %c0_11] : memref<2x3x3x16x16xf32, #tpu.memory_space<vmem>>, vector<2x1x1x16x16xf32>
    %9 = vector.shape_cast %8 : vector<2x1x1x16x16xf32> to vector<2x16x16xf32>
    %10 = vector.broadcast %7 : f32 to vector<2x16x16xf32>
    %11 = arith.mulf %10, %9 : vector<2x16x16xf32>
    %12 = arith.addf %6, %11 : vector<2x16x16xf32>
    %c0_12 = arith.constant 0 : index
    %c2 = arith.constant 2 : index
    %13 = memref.load %arg2[%c0_12, %c2] : memref<3x3xf32, #tpu.memory_space<smem>>
    %c0_13 = arith.constant 0 : index
    %c0_14 = arith.constant 0 : index
    %c2_15 = arith.constant 2 : index
    %c0_16 = arith.constant 0 : index
    %c0_17 = arith.constant 0 : index
    %14 = vector.load %arg1[%c0_13, %c0_14, %c2_15, %c0_16, %c0_17] : memref<2x3x3x16x16xf32, #tpu.memory_space<vmem>>, vector<2x1x1x16x16xf32>
    %15 = vector.shape_cast %14 : vector<2x1x1x16x16xf32> to vector<2x16x16xf32>
    %16 = vector.broadcast %13 : f32 to vector<2x16x16xf32>
    %17 = arith.mulf %16, %15 : vector<2x16x16xf32>
    %18 = arith.addf %12, %17 : vector<2x16x16xf32>
    %c1_18 = arith.constant 1 : index
    %c0_19 = arith.constant 0 : index
    %19 = memref.load %arg2[%c1_18, %c0_19] : memref<3x3xf32, #tpu.memory_space<smem>>
    %c0_20 = arith.constant 0 : index
    %c1_21 = arith.constant 1 : index
    %c0_22 = arith.constant 0 : index
    %c0_23 = arith.constant 0 : index
    %c0_24 = arith.constant 0 : index
    %20 = vector.load %arg1[%c0_20, %c1_21, %c0_22, %c0_23, %c0_24] : memref<2x3x3x16x16xf32, #tpu.memory_space<vmem>>, vector<2x1x1x16x16xf32>
    %21 = vector.shape_cast %20 : vector<2x1x1x16x16xf32> to vector<2x16x16xf32>
    %22 = vector.broadcast %19 : f32 to vector<2x16x16xf32>
    %23 = arith.mulf %22, %21 : vector<2x16x16xf32>
    %24 = arith.addf %18, %23 : vector<2x16x16xf32>
    %c1_25 = arith.constant 1 : index
    %c1_26 = arith.constant 1 : index
    %25 = memref.load %arg2[%c1_25, %c1_26] : memref<3x3xf32, #tpu.memory_space<smem>>
    %c0_27 = arith.constant 0 : index
    %c1_28 = arith.constant 1 : index
    %c1_29 = arith.constant 1 : index
    %c0_30 = arith.constant 0 : index
    %c0_31 = arith.constant 0 : index
    %26 = vector.load %arg1[%c0_27, %c1_28, %c1_29, %c0_30, %c0_31] : memref<2x3x3x16x16xf32, #tpu.memory_space<vmem>>, vector<2x1x1x16x16xf32>
    %27 = vector.shape_cast %26 : vector<2x1x1x16x16xf32> to vector<2x16x16xf32>
    %28 = vector.broadcast %25 : f32 to vector<2x16x16xf32>
    %29 = arith.mulf %28, %27 : vector<2x16x16xf32>
    %30 = arith.addf %24, %29 : vector<2x16x16xf32>
    %c1_32 = arith.constant 1 : index
    %c2_33 = arith.constant 2 : index
    %31 = memref.load %arg2[%c1_32, %c2_33] : memref<3x3xf32, #tpu.memory_space<smem>>
    %c0_34 = arith.constant 0 : index
    %c1_35 = arith.constant 1 : index
    %c2_36 = arith.constant 2 : index
    %c0_37 = arith.constant 0 : index
    %c0_38 = arith.constant 0 : index
    %32 = vector.load %arg1[%c0_34, %c1_35, %c2_36, %c0_37, %c0_38] : memref<2x3x3x16x16xf32, #tpu.memory_space<vmem>>, vector<2x1x1x16x16xf32>
    %33 = vector.shape_cast %32 : vector<2x1x1x16x16xf32> to vector<2x16x16xf32>
    %34 = vector.broadcast %31 : f32 to vector<2x16x16xf32>
    %35 = arith.mulf %34, %33 : vector<2x16x16xf32>
    %36 = arith.addf %30, %35 : vector<2x16x16xf32>
    %c2_39 = arith.constant 2 : index
    %c0_40 = arith.constant 0 : index
    %37 = memref.load %arg2[%c2_39, %c0_40] : memref<3x3xf32, #tpu.memory_space<smem>>
    %c0_41 = arith.constant 0 : index
    %c2_42 = arith.constant 2 : index
    %c0_43 = arith.constant 0 : index
    %c0_44 = arith.constant 0 : index
    %c0_45 = arith.constant 0 : index
    %38 = vector.load %arg1[%c0_41, %c2_42, %c0_43, %c0_44, %c0_45] : memref<2x3x3x16x16xf32, #tpu.memory_space<vmem>>, vector<2x1x1x16x16xf32>
    %39 = vector.shape_cast %38 : vector<2x1x1x16x16xf32> to vector<2x16x16xf32>
    %40 = vector.broadcast %37 : f32 to vector<2x16x16xf32>
    %41 = arith.mulf %40, %39 : vector<2x16x16xf32>
    %42 = arith.addf %36, %41 : vector<2x16x16xf32>
    %c2_46 = arith.constant 2 : index
    %c1_47 = arith.constant 1 : index
    %43 = memref.load %arg2[%c2_46, %c1_47] : memref<3x3xf32, #tpu.memory_space<smem>>
    %c0_48 = arith.constant 0 : index
    %c2_49 = arith.constant 2 : index
    %c1_50 = arith.constant 1 : index
    %c0_51 = arith.constant 0 : index
    %c0_52 = arith.constant 0 : index
    %44 = vector.load %arg1[%c0_48, %c2_49, %c1_50, %c0_51, %c0_52] : memref<2x3x3x16x16xf32, #tpu.memory_space<vmem>>, vector<2x1x1x16x16xf32>
    %45 = vector.shape_cast %44 : vector<2x1x1x16x16xf32> to vector<2x16x16xf32>
    %46 = vector.broadcast %43 : f32 to vector<2x16x16xf32>
    %47 = arith.mulf %46, %45 : vector<2x16x16xf32>
    %48 = arith.addf %42, %47 : vector<2x16x16xf32>
    %c2_53 = arith.constant 2 : index
    %c2_54 = arith.constant 2 : index
    %49 = memref.load %arg2[%c2_53, %c2_54] : memref<3x3xf32, #tpu.memory_space<smem>>
    %c0_55 = arith.constant 0 : index
    %c2_56 = arith.constant 2 : index
    %c2_57 = arith.constant 2 : index
    %c0_58 = arith.constant 0 : index
    %c0_59 = arith.constant 0 : index
    %50 = vector.load %arg1[%c0_55, %c2_56, %c2_57, %c0_58, %c0_59] : memref<2x3x3x16x16xf32, #tpu.memory_space<vmem>>, vector<2x1x1x16x16xf32>
    %51 = vector.shape_cast %50 : vector<2x1x1x16x16xf32> to vector<2x16x16xf32>
    %52 = vector.broadcast %49 : f32 to vector<2x16x16xf32>
    %53 = arith.mulf %52, %51 : vector<2x16x16xf32>
    %54 = arith.addf %48, %53 : vector<2x16x16xf32>
    %cst_60 = arith.constant 0.000000e+00 : f32
    %55 = vector.broadcast %cst_60 : f32 to vector<2x16x16xf32>
    %56 = arith.maximumf %54, %55 : vector<2x16x16xf32>
    %cst_61 = arith.constant 0.000000e+00 : f32
    %57 = vector.broadcast %cst_61 : f32 to vector<2x2x16xf32>
    %cst_62 = arith.constant 0.000000e+00 : f32
    %58 = vector.broadcast %cst_62 : f32 to vector<2x20x2xf32>
    %59 = tpu.concatenate %57, %56, %57 in 1 : vector<2x2x16xf32>, vector<2x16x16xf32>, vector<2x2x16xf32> -> vector<2x20x16xf32>
    %60 = tpu.concatenate %58, %59, %58 in 2 : vector<2x20x2xf32>, vector<2x20x16xf32>, vector<2x20x2xf32> -> vector<2x20x20xf32>
    %61 = vector.extract_strided_slice %60 {offsets = [0, 0, 0], sizes = [2, 20, 16], strides = [1, 1, 1]} : vector<2x20x20xf32> to vector<2x20x16xf32>
    %62 = vector.extract_strided_slice %60 {offsets = [0, 0, 1], sizes = [2, 20, 16], strides = [1, 1, 1]} : vector<2x20x20xf32> to vector<2x20x16xf32>
    %63 = vector.extract_strided_slice %60 {offsets = [0, 0, 2], sizes = [2, 20, 16], strides = [1, 1, 1]} : vector<2x20x20xf32> to vector<2x20x16xf32>
    %64 = vector.extract_strided_slice %60 {offsets = [0, 0, 3], sizes = [2, 20, 16], strides = [1, 1, 1]} : vector<2x20x20xf32> to vector<2x20x16xf32>
    %65 = vector.extract_strided_slice %60 {offsets = [0, 0, 4], sizes = [2, 20, 16], strides = [1, 1, 1]} : vector<2x20x20xf32> to vector<2x20x16xf32>
    %cst_63 = arith.constant 0.000000e+00 : f32
    %66 = vector.broadcast %cst_63 : f32 to vector<2x16x16xf32>
    %c0_64 = arith.constant 0 : index
    %c0_65 = arith.constant 0 : index
    %67 = memref.load %arg3[%c0_64, %c0_65] : memref<5x5xf32, #tpu.memory_space<smem>>
    %68 = vector.extract_strided_slice %61 {offsets = [0, 0, 0], sizes = [2, 16, 16], strides = [1, 1, 1]} : vector<2x20x16xf32> to vector<2x16x16xf32>
    %69 = vector.broadcast %67 : f32 to vector<2x16x16xf32>
    %70 = arith.mulf %69, %68 : vector<2x16x16xf32>
    %71 = arith.addf %66, %70 : vector<2x16x16xf32>
    %c0_66 = arith.constant 0 : index
    %c1_67 = arith.constant 1 : index
    %72 = memref.load %arg3[%c0_66, %c1_67] : memref<5x5xf32, #tpu.memory_space<smem>>
    %73 = vector.extract_strided_slice %62 {offsets = [0, 0, 0], sizes = [2, 16, 16], strides = [1, 1, 1]} : vector<2x20x16xf32> to vector<2x16x16xf32>
    %74 = vector.broadcast %72 : f32 to vector<2x16x16xf32>
    %75 = arith.mulf %74, %73 : vector<2x16x16xf32>
    %76 = arith.addf %71, %75 : vector<2x16x16xf32>
    %c0_68 = arith.constant 0 : index
    %c2_69 = arith.constant 2 : index
    %77 = memref.load %arg3[%c0_68, %c2_69] : memref<5x5xf32, #tpu.memory_space<smem>>
    %78 = vector.extract_strided_slice %63 {offsets = [0, 0, 0], sizes = [2, 16, 16], strides = [1, 1, 1]} : vector<2x20x16xf32> to vector<2x16x16xf32>
    %79 = vector.broadcast %77 : f32 to vector<2x16x16xf32>
    %80 = arith.mulf %79, %78 : vector<2x16x16xf32>
    %81 = arith.addf %76, %80 : vector<2x16x16xf32>
    %c0_70 = arith.constant 0 : index
    %c3 = arith.constant 3 : index
    %82 = memref.load %arg3[%c0_70, %c3] : memref<5x5xf32, #tpu.memory_space<smem>>
    %83 = vector.extract_strided_slice %64 {offsets = [0, 0, 0], sizes = [2, 16, 16], strides = [1, 1, 1]} : vector<2x20x16xf32> to vector<2x16x16xf32>
    %84 = vector.broadcast %82 : f32 to vector<2x16x16xf32>
    %85 = arith.mulf %84, %83 : vector<2x16x16xf32>
    %86 = arith.addf %81, %85 : vector<2x16x16xf32>
    %c0_71 = arith.constant 0 : index
    %c4 = arith.constant 4 : index
    %87 = memref.load %arg3[%c0_71, %c4] : memref<5x5xf32, #tpu.memory_space<smem>>
    %88 = vector.extract_strided_slice %65 {offsets = [0, 0, 0], sizes = [2, 16, 16], strides = [1, 1, 1]} : vector<2x20x16xf32> to vector<2x16x16xf32>
    %89 = vector.broadcast %87 : f32 to vector<2x16x16xf32>
    %90 = arith.mulf %89, %88 : vector<2x16x16xf32>
    %91 = arith.addf %86, %90 : vector<2x16x16xf32>
    %c1_72 = arith.constant 1 : index
    %c0_73 = arith.constant 0 : index
    %92 = memref.load %arg3[%c1_72, %c0_73] : memref<5x5xf32, #tpu.memory_space<smem>>
    %93 = vector.extract_strided_slice %61 {offsets = [0, 1, 0], sizes = [2, 16, 16], strides = [1, 1, 1]} : vector<2x20x16xf32> to vector<2x16x16xf32>
    %94 = vector.broadcast %92 : f32 to vector<2x16x16xf32>
    %95 = arith.mulf %94, %93 : vector<2x16x16xf32>
    %96 = arith.addf %91, %95 : vector<2x16x16xf32>
    %c1_74 = arith.constant 1 : index
    %c1_75 = arith.constant 1 : index
    %97 = memref.load %arg3[%c1_74, %c1_75] : memref<5x5xf32, #tpu.memory_space<smem>>
    %98 = vector.extract_strided_slice %62 {offsets = [0, 1, 0], sizes = [2, 16, 16], strides = [1, 1, 1]} : vector<2x20x16xf32> to vector<2x16x16xf32>
    %99 = vector.broadcast %97 : f32 to vector<2x16x16xf32>
    %100 = arith.mulf %99, %98 : vector<2x16x16xf32>
    %101 = arith.addf %96, %100 : vector<2x16x16xf32>
    %c1_76 = arith.constant 1 : index
    %c2_77 = arith.constant 2 : index
    %102 = memref.load %arg3[%c1_76, %c2_77] : memref<5x5xf32, #tpu.memory_space<smem>>
    %103 = vector.extract_strided_slice %63 {offsets = [0, 1, 0], sizes = [2, 16, 16], strides = [1, 1, 1]} : vector<2x20x16xf32> to vector<2x16x16xf32>
    %104 = vector.broadcast %102 : f32 to vector<2x16x16xf32>
    %105 = arith.mulf %104, %103 : vector<2x16x16xf32>
    %106 = arith.addf %101, %105 : vector<2x16x16xf32>
    %c1_78 = arith.constant 1 : index
    %c3_79 = arith.constant 3 : index
    %107 = memref.load %arg3[%c1_78, %c3_79] : memref<5x5xf32, #tpu.memory_space<smem>>
    %108 = vector.extract_strided_slice %64 {offsets = [0, 1, 0], sizes = [2, 16, 16], strides = [1, 1, 1]} : vector<2x20x16xf32> to vector<2x16x16xf32>
    %109 = vector.broadcast %107 : f32 to vector<2x16x16xf32>
    %110 = arith.mulf %109, %108 : vector<2x16x16xf32>
    %111 = arith.addf %106, %110 : vector<2x16x16xf32>
    %c1_80 = arith.constant 1 : index
    %c4_81 = arith.constant 4 : index
    %112 = memref.load %arg3[%c1_80, %c4_81] : memref<5x5xf32, #tpu.memory_space<smem>>
    %113 = vector.extract_strided_slice %65 {offsets = [0, 1, 0], sizes = [2, 16, 16], strides = [1, 1, 1]} : vector<2x20x16xf32> to vector<2x16x16xf32>
    %114 = vector.broadcast %112 : f32 to vector<2x16x16xf32>
    %115 = arith.mulf %114, %113 : vector<2x16x16xf32>
    %116 = arith.addf %111, %115 : vector<2x16x16xf32>
    %c2_82 = arith.constant 2 : index
    %c0_83 = arith.constant 0 : index
    %117 = memref.load %arg3[%c2_82, %c0_83] : memref<5x5xf32, #tpu.memory_space<smem>>
    %118 = vector.extract_strided_slice %61 {offsets = [0, 2, 0], sizes = [2, 16, 16], strides = [1, 1, 1]} : vector<2x20x16xf32> to vector<2x16x16xf32>
    %119 = vector.broadcast %117 : f32 to vector<2x16x16xf32>
    %120 = arith.mulf %119, %118 : vector<2x16x16xf32>
    %121 = arith.addf %116, %120 : vector<2x16x16xf32>
    %c2_84 = arith.constant 2 : index
    %c1_85 = arith.constant 1 : index
    %122 = memref.load %arg3[%c2_84, %c1_85] : memref<5x5xf32, #tpu.memory_space<smem>>
    %123 = vector.extract_strided_slice %62 {offsets = [0, 2, 0], sizes = [2, 16, 16], strides = [1, 1, 1]} : vector<2x20x16xf32> to vector<2x16x16xf32>
    %124 = vector.broadcast %122 : f32 to vector<2x16x16xf32>
    %125 = arith.mulf %124, %123 : vector<2x16x16xf32>
    %126 = arith.addf %121, %125 : vector<2x16x16xf32>
    %c2_86 = arith.constant 2 : index
    %c2_87 = arith.constant 2 : index
    %127 = memref.load %arg3[%c2_86, %c2_87] : memref<5x5xf32, #tpu.memory_space<smem>>
    %128 = vector.extract_strided_slice %63 {offsets = [0, 2, 0], sizes = [2, 16, 16], strides = [1, 1, 1]} : vector<2x20x16xf32> to vector<2x16x16xf32>
    %129 = vector.broadcast %127 : f32 to vector<2x16x16xf32>
    %130 = arith.mulf %129, %128 : vector<2x16x16xf32>
    %131 = arith.addf %126, %130 : vector<2x16x16xf32>
    %c2_88 = arith.constant 2 : index
    %c3_89 = arith.constant 3 : index
    %132 = memref.load %arg3[%c2_88, %c3_89] : memref<5x5xf32, #tpu.memory_space<smem>>
    %133 = vector.extract_strided_slice %64 {offsets = [0, 2, 0], sizes = [2, 16, 16], strides = [1, 1, 1]} : vector<2x20x16xf32> to vector<2x16x16xf32>
    %134 = vector.broadcast %132 : f32 to vector<2x16x16xf32>
    %135 = arith.mulf %134, %133 : vector<2x16x16xf32>
    %136 = arith.addf %131, %135 : vector<2x16x16xf32>
    %c2_90 = arith.constant 2 : index
    %c4_91 = arith.constant 4 : index
    %137 = memref.load %arg3[%c2_90, %c4_91] : memref<5x5xf32, #tpu.memory_space<smem>>
    %138 = vector.extract_strided_slice %65 {offsets = [0, 2, 0], sizes = [2, 16, 16], strides = [1, 1, 1]} : vector<2x20x16xf32> to vector<2x16x16xf32>
    %139 = vector.broadcast %137 : f32 to vector<2x16x16xf32>
    %140 = arith.mulf %139, %138 : vector<2x16x16xf32>
    %141 = arith.addf %136, %140 : vector<2x16x16xf32>
    %c3_92 = arith.constant 3 : index
    %c0_93 = arith.constant 0 : index
    %142 = memref.load %arg3[%c3_92, %c0_93] : memref<5x5xf32, #tpu.memory_space<smem>>
    %143 = vector.extract_strided_slice %61 {offsets = [0, 3, 0], sizes = [2, 16, 16], strides = [1, 1, 1]} : vector<2x20x16xf32> to vector<2x16x16xf32>
    %144 = vector.broadcast %142 : f32 to vector<2x16x16xf32>
    %145 = arith.mulf %144, %143 : vector<2x16x16xf32>
    %146 = arith.addf %141, %145 : vector<2x16x16xf32>
    %c3_94 = arith.constant 3 : index
    %c1_95 = arith.constant 1 : index
    %147 = memref.load %arg3[%c3_94, %c1_95] : memref<5x5xf32, #tpu.memory_space<smem>>
    %148 = vector.extract_strided_slice %62 {offsets = [0, 3, 0], sizes = [2, 16, 16], strides = [1, 1, 1]} : vector<2x20x16xf32> to vector<2x16x16xf32>
    %149 = vector.broadcast %147 : f32 to vector<2x16x16xf32>
    %150 = arith.mulf %149, %148 : vector<2x16x16xf32>
    %151 = arith.addf %146, %150 : vector<2x16x16xf32>
    %c3_96 = arith.constant 3 : index
    %c2_97 = arith.constant 2 : index
    %152 = memref.load %arg3[%c3_96, %c2_97] : memref<5x5xf32, #tpu.memory_space<smem>>
    %153 = vector.extract_strided_slice %63 {offsets = [0, 3, 0], sizes = [2, 16, 16], strides = [1, 1, 1]} : vector<2x20x16xf32> to vector<2x16x16xf32>
    %154 = vector.broadcast %152 : f32 to vector<2x16x16xf32>
    %155 = arith.mulf %154, %153 : vector<2x16x16xf32>
    %156 = arith.addf %151, %155 : vector<2x16x16xf32>
    %c3_98 = arith.constant 3 : index
    %c3_99 = arith.constant 3 : index
    %157 = memref.load %arg3[%c3_98, %c3_99] : memref<5x5xf32, #tpu.memory_space<smem>>
    %158 = vector.extract_strided_slice %64 {offsets = [0, 3, 0], sizes = [2, 16, 16], strides = [1, 1, 1]} : vector<2x20x16xf32> to vector<2x16x16xf32>
    %159 = vector.broadcast %157 : f32 to vector<2x16x16xf32>
    %160 = arith.mulf %159, %158 : vector<2x16x16xf32>
    %161 = arith.addf %156, %160 : vector<2x16x16xf32>
    %c3_100 = arith.constant 3 : index
    %c4_101 = arith.constant 4 : index
    %162 = memref.load %arg3[%c3_100, %c4_101] : memref<5x5xf32, #tpu.memory_space<smem>>
    %163 = vector.extract_strided_slice %65 {offsets = [0, 3, 0], sizes = [2, 16, 16], strides = [1, 1, 1]} : vector<2x20x16xf32> to vector<2x16x16xf32>
    %164 = vector.broadcast %162 : f32 to vector<2x16x16xf32>
    %165 = arith.mulf %164, %163 : vector<2x16x16xf32>
    %166 = arith.addf %161, %165 : vector<2x16x16xf32>
    %c4_102 = arith.constant 4 : index
    %c0_103 = arith.constant 0 : index
    %167 = memref.load %arg3[%c4_102, %c0_103] : memref<5x5xf32, #tpu.memory_space<smem>>
    %168 = vector.extract_strided_slice %61 {offsets = [0, 4, 0], sizes = [2, 16, 16], strides = [1, 1, 1]} : vector<2x20x16xf32> to vector<2x16x16xf32>
    %169 = vector.broadcast %167 : f32 to vector<2x16x16xf32>
    %170 = arith.mulf %169, %168 : vector<2x16x16xf32>
    %171 = arith.addf %166, %170 : vector<2x16x16xf32>
    %c4_104 = arith.constant 4 : index
    %c1_105 = arith.constant 1 : index
    %172 = memref.load %arg3[%c4_104, %c1_105] : memref<5x5xf32, #tpu.memory_space<smem>>
    %173 = vector.extract_strided_slice %62 {offsets = [0, 4, 0], sizes = [2, 16, 16], strides = [1, 1, 1]} : vector<2x20x16xf32> to vector<2x16x16xf32>
    %174 = vector.broadcast %172 : f32 to vector<2x16x16xf32>
    %175 = arith.mulf %174, %173 : vector<2x16x16xf32>
    %176 = arith.addf %171, %175 : vector<2x16x16xf32>
    %c4_106 = arith.constant 4 : index
    %c2_107 = arith.constant 2 : index
    %177 = memref.load %arg3[%c4_106, %c2_107] : memref<5x5xf32, #tpu.memory_space<smem>>
    %178 = vector.extract_strided_slice %63 {offsets = [0, 4, 0], sizes = [2, 16, 16], strides = [1, 1, 1]} : vector<2x20x16xf32> to vector<2x16x16xf32>
    %179 = vector.broadcast %177 : f32 to vector<2x16x16xf32>
    %180 = arith.mulf %179, %178 : vector<2x16x16xf32>
    %181 = arith.addf %176, %180 : vector<2x16x16xf32>
    %c4_108 = arith.constant 4 : index
    %c3_109 = arith.constant 3 : index
    %182 = memref.load %arg3[%c4_108, %c3_109] : memref<5x5xf32, #tpu.memory_space<smem>>
    %183 = vector.extract_strided_slice %64 {offsets = [0, 4, 0], sizes = [2, 16, 16], strides = [1, 1, 1]} : vector<2x20x16xf32> to vector<2x16x16xf32>
    %184 = vector.broadcast %182 : f32 to vector<2x16x16xf32>
    %185 = arith.mulf %184, %183 : vector<2x16x16xf32>
    %186 = arith.addf %181, %185 : vector<2x16x16xf32>
    %c4_110 = arith.constant 4 : index
    %c4_111 = arith.constant 4 : index
    %187 = memref.load %arg3[%c4_110, %c4_111] : memref<5x5xf32, #tpu.memory_space<smem>>
    %188 = vector.extract_strided_slice %65 {offsets = [0, 4, 0], sizes = [2, 16, 16], strides = [1, 1, 1]} : vector<2x20x16xf32> to vector<2x16x16xf32>
    %189 = vector.broadcast %187 : f32 to vector<2x16x16xf32>
    %190 = arith.mulf %189, %188 : vector<2x16x16xf32>
    %191 = arith.addf %186, %190 : vector<2x16x16xf32>
    %192 = arith.negf %191 : vector<2x16x16xf32>
    %193 = math.exp %192 : vector<2x16x16xf32>
    %cst_112 = arith.constant 1.000000e+00 : f32
    %194 = vector.broadcast %cst_112 : f32 to vector<2x16x16xf32>
    %195 = arith.addf %194, %193 : vector<2x16x16xf32>
    %196 = arith.divf %194, %195 : vector<2x16x16xf32>
    %c0_113 = arith.constant 0 : index
    %c0_114 = arith.constant 0 : index
    %c0_115 = arith.constant 0 : index
    %197 = vector.load %arg4[%c0_113, %c0_114, %c0_115] : memref<2x16x16xf32, #tpu.memory_space<vmem>>, vector<2x16x16xf32>
    tpu.vector_store %arg4[%c0_113, %c0_114, %c0_115], %196 {strides = array<i32>} : memref<2x16x16xf32, #tpu.memory_space<vmem>>, vector<2x16x16xf32>,
    return
  }
  func.func @transform_0(%arg0: i32) -> (i32, i32, i32, i32, i32) {
    %c0_i32 = arith.constant 0 : i32
    %c0_i32_0 = arith.constant 0 : i32
    %c0_i32_1 = arith.constant 0 : i32
    %c0_i32_2 = arith.constant 0 : i32
    %c0_i32_3 = arith.constant 0 : i32
    return %arg0, %c0_i32, %c0_i32_0, %c0_i32_1, %c0_i32_2 : i32, i32, i32, i32, i32
  }
  func.func @transform_1(%arg0: i32) -> (i32, i32) {
    %c0_i32 = arith.constant 0 : i32
    %c0_i32_0 = arith.constant 0 : i32
    %c0_i32_1 = arith.constant 0 : i32
    return %c0_i32, %c0_i32_0 : i32, i32
  }
  func.func @transform_2(%arg0: i32) -> (i32, i32) {
    %c0_i32 = arith.constant 0 : i32
    %c0_i32_0 = arith.constant 0 : i32
    %c0_i32_1 = arith.constant 0 : i32
    return %c0_i32, %c0_i32_0 : i32, i32
  }
  func.func @transform_3(%arg0: i32) -> (i32, i32, i32) {
    %c0_i32 = arith.constant 0 : i32
    %c0_i32_0 = arith.constant 0 : i32
    %c0_i32_1 = arith.constant 0 : i32
    return %arg0, %c0_i32, %c0_i32_0 : i32, i32, i32
  }
}

</mosaic_0001>

<llo_original>
// kernel: motion_strength.1
$region0: #{motion_strength.1}
  #allocation0 [shape = 'u32[]', space=smem, size = 0x4, offset = 0x4, fixed_abs, tag = 'smem constant byte address 0x4 - core index']
  #allocation1 [shape = 'u32[144,128]{1,0:T(1,128)}', space=vmem, size = 0x12000, scoped, tag = 'internal scratch']
  %s0 = inlined_call_operand.vmem [shape: f32[2,3,3,16,16], index: 0, kind: input, shape index: {}]
  %s1 = inlined_call_operand.vmem [shape: f32[3,3], index: 1, kind: input, shape index: {}]
  %s2 = inlined_call_operand.vmem [shape: f32[5,5], index: 2, kind: input, shape index: {}]
  %s3 = inlined_call_operand.hbm [shape: f32[2,16,16], index: 3, kind: output, shape index: {}]
  %s4 = sld [smem:[#allocation0]]
  $region30: #{motion_strength.1} parent=0
    _
  %s6 = ssub.s32 1, %s4
  %s7 = scalar_select 0, %s6, %s4
  $region1: #{motion_strength.1} parent=0
    #allocation2 [shape = 'u8[2048]{0}', space=smem, size = 0x800, scoped, tag = 'input window, operand 1, single buffered']
    #allocation3 [shape = 's32[1]{0}', space=sflag, size = 0x4, scoped, tag = 'scoped memory for motion_strength.1']
    #allocation4 [shape = 's32[1]{0}', space=sflag, size = 0x4, scoped, tag = 'scoped memory for motion_strength.1']
    #allocation5 [shape = 'u8[4096]{0}', space=smem, size = 0x1000, scoped, tag = 'input window, operand 2, single buffered']
    #allocation6 [shape = 's32[1]{0}', space=sflag, size = 0x4, scoped, tag = 'scoped memory for motion_strength.1']
    #allocation7 [shape = 'u8[16384]{0}', space=vmem, size = 0x4000, scoped, tag = 'output window, operand 0, single buffered']
    %8 = vsyncpa [#allocation4], 0
    %9 = vsyncpa [#allocation6], 0
    %10 = vsyncpa [#allocation3], 0
    // Predicated region
    $region2: #{motion_strength.1} parent=1 // pred_check
      _
    $region3: #{motion_strength.1} parent=1 // pred_check_branch
      %12 = sbr.rel (0) target = $region5
    $region4: #{motion_strength.1} parent=1 // pred_region
      _
    $region5: #{motion_strength.1} parent=1 // pred_fallthru
      _
    // Predicated region
    $region6: #{motion_strength.1} parent=1 // pred_check
      _
    $region7: #{motion_strength.1} parent=1 // pred_check_branch
      %14 = sbr.rel (0) target = $region9
    $region8: #{motion_strength.1} parent=1 // pred_region
      %s16 = ssub.s32 64, 64
      %17 = vsyncadd [#allocation4], %s16
      %s19 = sshll.u32 %s1, 4
      %s20 = int_to_ptr.vmem [resolvable:$true] %s19
      %22 = dma.vmem_to_smem %s20, 64, [#allocation2], [#allocation4]
    $region9: #{motion_strength.1} parent=1 // pred_fallthru
      _
    // Predicated region
    $region10: #{motion_strength.1} parent=1 // pred_check
      _
    $region11: #{motion_strength.1} parent=1 // pred_check_branch
      %24 = sbr.rel (0) target = $region13
    $region12: #{motion_strength.1} parent=1 // pred_region
      %s26 = ssub.s32 128, 128
      %27 = vsyncadd [#allocation6], %s26
      %s29 = sshll.u32 %s2, 4
      %s30 = int_to_ptr.vmem [resolvable:$true] %s29
      %32 = dma.vmem_to_smem %s30, 128, [#allocation5], [#allocation6]
    $region13: #{motion_strength.1} parent=1 // pred_fallthru
      _
    // Predicated region
    $region14: #{motion_strength.1} parent=1 // pred_check
      _
    $region15: #{motion_strength.1} parent=1 // pred_check_branch
      %34 = sbr.rel (0) target = $region17
    $region16: #{motion_strength.1} parent=1 // pred_region
      %35 = dma.done [#allocation4], 64
    $region17: #{motion_strength.1} parent=1 // pred_fallthru
      _
    // Predicated region
    $region18: #{motion_strength.1} parent=1 // pred_check
      _
    $region19: #{motion_strength.1} parent=1 // pred_check_branch
      %37 = sbr.rel (0) target = $region21
    $region20: #{motion_strength.1} parent=1 // pred_region
      %38 = dma.done [#allocation6], 128
    $region21: #{motion_strength.1} parent=1 // pred_fallthru
      _
    %39 = sfence
    %s40 = sld [smem:[#allocation2]]
    %v41 = vld [vmem:[%s0] sm:$0xff]
    %v42 = vld [vmem:[%s0 + $0x8] sm:$0xff]
    %v43 = vld [vmem:[%s0 + $0x90] sm:$0xff]
    %v44 = vld [vmem:[%s0 + $0x98] sm:$0xff]
    %v45 = vstv %s40
    %v46 = vmul.f32 %v45, %v41
    %v47 = vmul.f32 %v45, %v42
    %v48 = vmul.f32 %v45, %v43
    %v49 = vmul.f32 %v45, %v44
    %v50 = vadd.f32 %v46, 0.0
    %v51 = vadd.f32 %v47, 0.0
    %v52 = vadd.f32 %v48, 0.0
    %v53 = vadd.f32 %v49, 0.0
    %s54 = sld [smem:[#allocation2 + $0x1]]
    %s55 = scalar_lea.vmem %s0, 16
    %v56 = vld [vmem:[%s55] sm:$0xff]
    %v57 = vld [vmem:[%s55 + $0x8] sm:$0xff]
    %v58 = vld [vmem:[%s55 + $0x90] sm:$0xff]
    %v59 = vld [vmem:[%s55 + $0x98] sm:$0xff]
    %v60 = vstv %s54
    %v61 = vmul.f32 %v60, %v56
    %v62 = vmul.f32 %v60, %v57
    %v63 = vmul.f32 %v60, %v58
    %v64 = vmul.f32 %v60, %v59
    %v65 = vadd.f32 %v50, %v61
    %v66 = vadd.f32 %v51, %v62
    %v67 = vadd.f32 %v52, %v63
    %v68 = vadd.f32 %v53, %v64
    %s69 = sld [smem:[#allocation2 + $0x2]]
    %s70 = scalar_lea.vmem %s0, 32
    %v71 = vld [vmem:[%s70] sm:$0xff]
    %v72 = vld [vmem:[%s70 + $0x8] sm:$0xff]
    %v73 = vld [vmem:[%s70 + $0x90] sm:$0xff]
    %v74 = vld [vmem:[%s70 + $0x98] sm:$0xff]
    %v75 = vstv %s69
    %v76 = vmul.f32 %v75, %v71
    %v77 = vmul.f32 %v75, %v72
    %v78 = vmul.f32 %v75, %v73
    %v79 = vmul.f32 %v75, %v74
    %v80 = vadd.f32 %v65, %v76
    %v81 = vadd.f32 %v66, %v77
    %v82 = vadd.f32 %v67, %v78
    %v83 = vadd.f32 %v68, %v79
    %s84 = sld [smem:[#allocation2 + $0x80]]
    %s85 = scalar_lea.vmem %s0, 48
    %v86 = vld [vmem:[%s85] sm:$0xff]
    %v87 = vld [vmem:[%s85 + $0x8] sm:$0xff]
    %v88 = vld [vmem:[%s85 + $0x90] sm:$0xff]
    %v89 = vld [vmem:[%s85 + $0x98] sm:$0xff]
    %v90 = vstv %s84
    %v91 = vmul.f32 %v90, %v86
    %v92 = vmul.f32 %v90, %v87
    %v93 = vmul.f32 %v90, %v88
    %v94 = vmul.f32 %v90, %v89
    %v95 = vadd.f32 %v80, %v91
    %v96 = vadd.f32 %v81, %v92
    %v97 = vadd.f32 %v82, %v93
    %v98 = vadd.f32 %v83, %v94
    %s99 = sld [smem:[#allocation2 + $0x81]]
    %s100 = scalar_lea.vmem %s0, 64
    %v101 = vld [vmem:[%s100] sm:$0xff]
    %v102 = vld [vmem:[%s100 + $0x8] sm:$0xff]
    %v103 = vld [vmem:[%s100 + $0x90] sm:$0xff]
    %v104 = vld [vmem:[%s100 + $0x98] sm:$0xff]
    %v105 = vstv %s99
    %v106 = vmul.f32 %v105, %v101
    %v107 = vmul.f32 %v105, %v102
    %v108 = vmul.f32 %v105, %v103
    %v109 = vmul.f32 %v105, %v104
    %v110 = vadd.f32 %v95, %v106
    %v111 = vadd.f32 %v96, %v107
    %v112 = vadd.f32 %v97, %v108
    %v113 = vadd.f32 %v98, %v109
    %s114 = sld [smem:[#allocation2 + $0x82]]
    %s115 = scalar_lea.vmem %s0, 80
    %v116 = vld [vmem:[%s115] sm:$0xff]
    %v117 = vld [vmem:[%s115 + $0x8] sm:$0xff]
    %v118 = vld [vmem:[%s115 + $0x90] sm:$0xff]
    %v119 = vld [vmem:[%s115 + $0x98] sm:$0xff]
    %v120 = vstv %s114
    %v121 = vmul.f32 %v120, %v116
    %v122 = vmul.f32 %v120, %v117
    %v123 = vmul.f32 %v120, %v118
    %v124 = vmul.f32 %v120, %v119
    %v125 = vadd.f32 %v110, %v121
    %v126 = vadd.f32 %v111, %v122
    %v127 = vadd.f32 %v112, %v123
    %v128 = vadd.f32 %v113, %v124
    %s129 = sld [smem:[#allocation2 + $0x100]]
    %s130 = scalar_lea.vmem %s0, 96
    %v131 = vld [vmem:[%s130] sm:$0xff]
    %v132 = vld [vmem:[%s130 + $0x8] sm:$0xff]
    %v133 = vld [vmem:[%s130 + $0x90] sm:$0xff]
    %v134 = vld [vmem:[%s130 + $0x98] sm:$0xff]
    %v135 = vstv %s129
    %v136 = vmul.f32 %v135, %v131
    %v137 = vmul.f32 %v135, %v132
    %v138 = vmul.f32 %v135, %v133
    %v139 = vmul.f32 %v135, %v134
    %v140 = vadd.f32 %v125, %v136
    %v141 = vadd.f32 %v126, %v137
    %v142 = vadd.f32 %v127, %v138
    %v143 = vadd.f32 %v128, %v139
    %s144 = sld [smem:[#allocation2 + $0x101]]
    %s145 = scalar_lea.vmem %s0, 112
    %v146 = vld [vmem:[%s145] sm:$0xff]
    %v147 = vld [vmem:[%s145 + $0x8] sm:$0xff]
    %v148 = vld [vmem:[%s145 + $0x90] sm:$0xff]
    %v149 = vld [vmem:[%s145 + $0x98] sm:$0xff]
    %v150 = vstv %s144
    %v151 = vmul.f32 %v150, %v146
    %v152 = vmul.f32 %v150, %v147
    %v153 = vmul.f32 %v150, %v148
    %v154 = vmul.f32 %v150, %v149
    %v155 = vadd.f32 %v140, %v151
    %v156 = vadd.f32 %v141, %v152
    %v157 = vadd.f32 %v142, %v153
    %v158 = vadd.f32 %v143, %v154
    %s159 = sld [smem:[#allocation2 + $0x102]]
    %s160 = scalar_lea.vmem %s0, 128
    %v161 = vld [vmem:[%s160] sm:$0xff]
    %v162 = vld [vmem:[%s160 + $0x8] sm:$0xff]
    %v163 = vld [vmem:[%s160 + $0x90] sm:$0xff]
    %v164 = vld [vmem:[%s160 + $0x98] sm:$0xff]
    %v165 = vstv %s159
    %v166 = vmul.f32 %v165, %v161
    %v167 = vmul.f32 %v165, %v162
    %v168 = vmul.f32 %v165, %v163
    %v169 = vmul.f32 %v165, %v164
    %v170 = vadd.f32 %v155, %v166
    %v171 = vadd.f32 %v156, %v167
    %v172 = vadd.f32 %v157, %v168
    %v173 = vadd.f32 %v158, %v169
    %v174 = vmax.f32 %v170, 0.0
    %v175 = vmax.f32 %v171, 0.0
    %v176 = vmax.f32 %v172, 0.0
    %v177 = vmax.f32 %v173, 0.0
    %vm182 = vcmask 1041408
    %v183 = vrot.slane %v174, 6
    %v184 = vrot.slane %v175, 6
    %v185 = vsel %vm182, %v183, %v184
    %v186 = vrot.slane %v176, 6
    %v187 = vrot.slane %v177, 6
    %v188 = vsel %vm182, %v186, %v187
    %v193 = vsel %vm182, 0.0, %v183
    %v194 = vsel %vm182, 0.0, %v186
    %v195 = vsel %vm182, %v184, 0.0
    %v196 = vsel %vm182, %v187, 0.0
    %201 = vrot.lane.b32.xlu0 %v193, 2
    %v202 = vpop.permute.xlu0 %201
    %203 = vrot.lane.b32.xlu0 %v185, 2
    %v204 = vpop.permute.xlu0 %203
    %205 = vrot.lane.b32.xlu0 %v195, 2
    %v206 = vpop.permute.xlu0 %205
    %207 = vrot.lane.b32.xlu0 %v194, 2
    %v208 = vpop.permute.xlu0 %207
    %209 = vrot.lane.b32.xlu0 %v188, 2
    %v210 = vpop.permute.xlu0 %209
    %211 = vrot.lane.b32.xlu0 %v196, 2
    %v212 = vpop.permute.xlu0 %211
    %vm219 = vcmask 15360
    %v220 = vsel %vm219, 0.0, %v202
    %v221 = vsel %vm219, 0.0, %v204
    %v222 = vsel %vm219, 0.0, %v206
    %v223 = vsel %vm219, 0.0, %v208
    %v224 = vsel %vm219, 0.0, %v210
    %v225 = vsel %vm219, 0.0, %v212
    %vm226 = vcmask 146432
    %v227 = vsel %vm226, %v220, 0.0
    %v228 = vsel %vm226, %v221, 0.0
    %v229 = vsel %vm226, %v222, 0.0
    %v230 = vsel %vm226, %v223, 0.0
    %v231 = vsel %vm226, %v224, 0.0
    %v232 = vsel %vm226, %v225, 0.0
    %s233 = sld [smem:[#allocation5]]
    %v234 = vstv %s233
    %v235 = vmul.f32 %v234, %v227
    %v236 = vmul.f32 %v234, %v228
    %v237 = vmul.f32 %v234, %v230
    %v238 = vmul.f32 %v234, %v231
    %v239 = vadd.f32 %v235, 0.0
    %v240 = vadd.f32 %v236, 0.0
    %v241 = vadd.f32 %v237, 0.0
    %v242 = vadd.f32 %v238, 0.0
    %s243 = sld [smem:[#allocation5 + $0x1]]
    %v244 = vstv %s243
    %v245 = vmul.f32 %v244, %v227
    %v246 = vmul.f32 %v244, %v228
    %v247 = vmul.f32 %v244, %v230
    %v248 = vmul.f32 %v244, %v231
    %253 = vrot.lane.b32.xlu0 %v245, 127
    %v254 = vpop.permute.xlu0 %253
    %255 = vrot.lane.b32.xlu0 %v246, 127
    %v256 = vpop.permute.xlu0 %255
    %257 = vrot.lane.b32.xlu0 %v247, 127
    %v258 = vpop.permute.xlu0 %257
    %259 = vrot.lane.b32.xlu0 %v248, 127
    %v260 = vpop.permute.xlu0 %259
    %v265 = vadd.f32 %v239, %v254
    %v266 = vadd.f32 %v240, %v256
    %v267 = vadd.f32 %v241, %v258
    %v268 = vadd.f32 %v242, %v260
    %s269 = sld [smem:[#allocation5 + $0x2]]
    %v270 = vstv %s269
    %v271 = vmul.f32 %v270, %v227
    %v272 = vmul.f32 %v270, %v228
    %v273 = vmul.f32 %v270, %v230
    %v274 = vmul.f32 %v270, %v231
    %279 = vrot.lane.b32.xlu0 %v271, 126
    %v280 = vpop.permute.xlu0 %279
    %281 = vrot.lane.b32.xlu0 %v272, 126
    %v282 = vpop.permute.xlu0 %281
    %283 = vrot.lane.b32.xlu0 %v273, 126
    %v284 = vpop.permute.xlu0 %283
    %285 = vrot.lane.b32.xlu0 %v274, 126
    %v286 = vpop.permute.xlu0 %285
    %v291 = vadd.f32 %v265, %v280
    %v292 = vadd.f32 %v266, %v282
    %v293 = vadd.f32 %v267, %v284
    %v294 = vadd.f32 %v268, %v286
    %s295 = sld [smem:[#allocation5 + $0x3]]
    %v296 = vstv %s295
    %v297 = vmul.f32 %v296, %v227
    %v298 = vmul.f32 %v296, %v228
    %v299 = vmul.f32 %v296, %v230
    %v300 = vmul.f32 %v296, %v231
    %305 = vrot.lane.b32.xlu0 %v297, 125
    %v306 = vpop.permute.xlu0 %305
    %307 = vrot.lane.b32.xlu0 %v298, 125
    %v308 = vpop.permute.xlu0 %307
    %309 = vrot.lane.b32.xlu0 %v299, 125
    %v310 = vpop.permute.xlu0 %309
    %311 = vrot.lane.b32.xlu0 %v300, 125
    %v312 = vpop.permute.xlu0 %311
    %v317 = vadd.f32 %v291, %v306
    %v318 = vadd.f32 %v292, %v308
    %v319 = vadd.f32 %v293, %v310
    %v320 = vadd.f32 %v294, %v312
    %s321 = sld [smem:[#allocation5 + $0x4]]
    %v322 = vstv %s321
    %v323 = vmul.f32 %v322, %v227
    %v324 = vmul.f32 %v322, %v228
    %v325 = vmul.f32 %v322, %v230
    %v326 = vmul.f32 %v322, %v231
    %331 = vrot.lane.b32.xlu0 %v323, 124
    %v332 = vpop.permute.xlu0 %331
    %333 = vrot.lane.b32.xlu0 %v324, 124
    %v334 = vpop.permute.xlu0 %333
    %335 = vrot.lane.b32.xlu0 %v325, 124
    %v336 = vpop.permute.xlu0 %335
    %337 = vrot.lane.b32.xlu0 %v326, 124
    %v338 = vpop.permute.xlu0 %337
    %v343 = vadd.f32 %v317, %v332
    %v344 = vadd.f32 %v318, %v334
    %v345 = vadd.f32 %v319, %v336
    %v346 = vadd.f32 %v320, %v338
    %s347 = sld [smem:[#allocation5 + $0x80]]
    %v348 = vstv %s347
    %v349 = vmul.f32 %v348, %v227
    %v350 = vmul.f32 %v348, %v228
    %v351 = vmul.f32 %v348, %v229
    %v352 = vmul.f32 %v348, %v230
    %v353 = vmul.f32 %v348, %v231
    %v354 = vmul.f32 %v348, %v232
    %vm361 = vcmask 1046528
    %v362 = vrot.slane %v349, 1
    %v363 = vrot.slane %v350, 1
    %v364 = vsel %vm361, %v362, %v363
    %v365 = vrot.slane %v351, 1
    %v366 = vsel %vm361, %v363, %v365
    %v367 = vrot.slane %v352, 1
    %v368 = vrot.slane %v353, 1
    %v369 = vsel %vm361, %v367, %v368
    %v370 = vrot.slane %v354, 1
    %v371 = vsel %vm361, %v368, %v370
    %v376 = vadd.f32 %v343, %v364
    %v377 = vadd.f32 %v344, %v366
    %v378 = vadd.f32 %v345, %v369
    %v379 = vadd.f32 %v346, %v371
    %s380 = sld [smem:[#allocation5 + $0x81]]
    %v381 = vstv %s380
    %v382 = vmul.f32 %v381, %v227
    %v383 = vmul.f32 %v381, %v228
    %v384 = vmul.f32 %v381, %v229
    %v385 = vmul.f32 %v381, %v230
    %v386 = vmul.f32 %v381, %v231
    %v387 = vmul.f32 %v381, %v232
    %v394 = vrot.slane %v382, 1
    %v395 = vrot.slane %v383, 1
    %v396 = vsel %vm361, %v394, %v395
    %v397 = vrot.slane %v384, 1
    %v398 = vsel %vm361, %v395, %v397
    %v399 = vrot.slane %v385, 1
    %v400 = vrot.slane %v386, 1
    %v401 = vsel %vm361, %v399, %v400
    %v402 = vrot.slane %v387, 1
    %v403 = vsel %vm361, %v400, %v402
    %404 = vrot.lane.b32.xlu0 %v396, 127
    %v405 = vpop.permute.xlu0 %404
    %406 = vrot.lane.b32.xlu0 %v398, 127
    %v407 = vpop.permute.xlu0 %406
    %408 = vrot.lane.b32.xlu0 %v401, 127
    %v409 = vpop.permute.xlu0 %408
    %410 = vrot.lane.b32.xlu0 %v403, 127
    %v411 = vpop.permute.xlu0 %410
    %v416 = vadd.f32 %v376, %v405
    %v417 = vadd.f32 %v377, %v407
    %v418 = vadd.f32 %v378, %v409
    %v419 = vadd.f32 %v379, %v411
    %s420 = sld [smem:[#allocation5 + $0x82]]
    %v421 = vstv %s420
    %v422 = vmul.f32 %v421, %v227
    %v423 = vmul.f32 %v421, %v228
    %v424 = vmul.f32 %v421, %v229
    %v425 = vmul.f32 %v421, %v230
    %v426 = vmul.f32 %v421, %v231
    %v427 = vmul.f32 %v421, %v232
    %v434 = vrot.slane %v422, 1
    %v435 = vrot.slane %v423, 1
    %v436 = vsel %vm361, %v434, %v435
    %v437 = vrot.slane %v424, 1
    %v438 = vsel %vm361, %v435, %v437
    %v439 = vrot.slane %v425, 1
    %v440 = vrot.slane %v426, 1
    %v441 = vsel %vm361, %v439, %v440
    %v442 = vrot.slane %v427, 1
    %v443 = vsel %vm361, %v440, %v442
    %444 = vrot.lane.b32.xlu0 %v436, 126
    %v445 = vpop.permute.xlu0 %444
    %446 = vrot.lane.b32.xlu0 %v438, 126
    %v447 = vpop.permute.xlu0 %446
    %448 = vrot.lane.b32.xlu0 %v441, 126
    %v449 = vpop.permute.xlu0 %448
    %450 = vrot.lane.b32.xlu0 %v443, 126
    %v451 = vpop.permute.xlu0 %450
    %v456 = vadd.f32 %v416, %v445
    %v457 = vadd.f32 %v417, %v447
    %v458 = vadd.f32 %v418, %v449
    %v459 = vadd.f32 %v419, %v451
    %s460 = sld [smem:[#allocation5 + $0x83]]
    %v461 = vstv %s460
    %v462 = vmul.f32 %v461, %v227
    %v463 = vmul.f32 %v461, %v228
    %v464 = vmul.f32 %v461, %v229
    %v465 = vmul.f32 %v461, %v230
    %v466 = vmul.f32 %v461, %v231
    %v467 = vmul.f32 %v461, %v232
    %v474 = vrot.slane %v462, 1
    %v475 = vrot.slane %v463, 1
    %v476 = vsel %vm361, %v474, %v475
    %v477 = vrot.slane %v464, 1
    %v478 = vsel %vm361, %v475, %v477
    %v479 = vrot.slane %v465, 1
    %v480 = vrot.slane %v466, 1
    %v481 = vsel %vm361, %v479, %v480
    %v482 = vrot.slane %v467, 1
    %v483 = vsel %vm361, %v480, %v482
    %484 = vrot.lane.b32.xlu0 %v476, 125
    %v485 = vpop.permute.xlu0 %484
    %486 = vrot.lane.b32.xlu0 %v478, 125
    %v487 = vpop.permute.xlu0 %486
    %488 = vrot.lane.b32.xlu0 %v481, 125
    %v489 = vpop.permute.xlu0 %488
    %490 = vrot.lane.b32.xlu0 %v483, 125
    %v491 = vpop.permute.xlu0 %490
    %v496 = vadd.f32 %v456, %v485
    %v497 = vadd.f32 %v457, %v487
    %v498 = vadd.f32 %v458, %v489
    %v499 = vadd.f32 %v459, %v491
    %s500 = sld [smem:[#allocation5 + $0x84]]
    %v501 = vstv %s500
    %v502 = vmul.f32 %v501, %v227
    %v503 = vmul.f32 %v501, %v228
    %v504 = vmul.f32 %v501, %v229
    %v505 = vmul.f32 %v501, %v230
    %v506 = vmul.f32 %v501, %v231
    %v507 = vmul.f32 %v501, %v232
    %v514 = vrot.slane %v502, 1
    %v515 = vrot.slane %v503, 1
    %v516 = vsel %vm361, %v514, %v515
    %v517 = vrot.slane %v504, 1
    %v518 = vsel %vm361, %v515, %v517
    %v519 = vrot.slane %v505, 1
    %v520 = vrot.slane %v506, 1
    %v521 = vsel %vm361, %v519, %v520
    %v522 = vrot.slane %v507, 1
    %v523 = vsel %vm361, %v520, %v522
    %524 = vrot.lane.b32.xlu0 %v516, 124
    %v525 = vpop.permute.xlu0 %524
    %526 = vrot.lane.b32.xlu0 %v518, 124
    %v527 = vpop.permute.xlu0 %526
    %528 = vrot.lane.b32.xlu0 %v521, 124
    %v529 = vpop.permute.xlu0 %528
    %530 = vrot.lane.b32.xlu0 %v523, 124
    %v531 = vpop.permute.xlu0 %530
    %v536 = vadd.f32 %v496, %v525
    %v537 = vadd.f32 %v497, %v527
    %v538 = vadd.f32 %v498, %v529
    %v539 = vadd.f32 %v499, %v531
    %s540 = sld [smem:[#allocation5 + $0x100]]
    %v541 = vstv %s540
    %v542 = vmul.f32 %v541, %v227
    %v543 = vmul.f32 %v541, %v228
    %v544 = vmul.f32 %v541, %v229
    %v545 = vmul.f32 %v541, %v230
    %v546 = vmul.f32 %v541, %v231
    %v547 = vmul.f32 %v541, %v232
    %vm554 = vcmask 1045504
    %v555 = vrot.slane %v542, 2
    %v556 = vrot.slane %v543, 2
    %v557 = vsel %vm554, %v555, %v556
    %v558 = vrot.slane %v544, 2
    %v559 = vsel %vm554, %v556, %v558
    %v560 = vrot.slane %v545, 2
    %v561 = vrot.slane %v546, 2
    %v562 = vsel %vm554, %v560, %v561
    %v563 = vrot.slane %v547, 2
    %v564 = vsel %vm554, %v561, %v563
    %v569 = vadd.f32 %v536, %v557
    %v570 = vadd.f32 %v537, %v559
    %v571 = vadd.f32 %v538, %v562
    %v572 = vadd.f32 %v539, %v564
    %s573 = sld [smem:[#allocation5 + $0x101]]
    %v574 = vstv %s573
    %v575 = vmul.f32 %v574, %v227
    %v576 = vmul.f32 %v574, %v228
    %v577 = vmul.f32 %v574, %v229
    %v578 = vmul.f32 %v574, %v230
    %v579 = vmul.f32 %v574, %v231
    %v580 = vmul.f32 %v574, %v232
    %v587 = vrot.slane %v575, 2
    %v588 = vrot.slane %v576, 2
    %v589 = vsel %vm554, %v587, %v588
    %v590 = vrot.slane %v577, 2
    %v591 = vsel %vm554, %v588, %v590
    %v592 = vrot.slane %v578, 2
    %v593 = vrot.slane %v579, 2
    %v594 = vsel %vm554, %v592, %v593
    %v595 = vrot.slane %v580, 2
    %v596 = vsel %vm554, %v593, %v595
    %597 = vrot.lane.b32.xlu0 %v589, 127
    %v598 = vpop.permute.xlu0 %597
    %599 = vrot.lane.b32.xlu0 %v591, 127
    %v600 = vpop.permute.xlu0 %599
    %601 = vrot.lane.b32.xlu0 %v594, 127
    %v602 = vpop.permute.xlu0 %601
    %603 = vrot.lane.b32.xlu0 %v596, 127
    %v604 = vpop.permute.xlu0 %603
    %v609 = vadd.f32 %v569, %v598
    %v610 = vadd.f32 %v570, %v600
    %v611 = vadd.f32 %v571, %v602
    %v612 = vadd.f32 %v572, %v604
    %s613 = sld [smem:[#allocation5 + $0x102]]
    %v614 = vstv %s613
    %v615 = vmul.f32 %v614, %v227
    %v616 = vmul.f32 %v614, %v228
    %v617 = vmul.f32 %v614, %v229
    %v618 = vmul.f32 %v614, %v230
    %v619 = vmul.f32 %v614, %v231
    %v620 = vmul.f32 %v614, %v232
    %v627 = vrot.slane %v615, 2
    %v628 = vrot.slane %v616, 2
    %v629 = vsel %vm554, %v627, %v628
    %v630 = vrot.slane %v617, 2
    %v631 = vsel %vm554, %v628, %v630
    %v632 = vrot.slane %v618, 2
    %v633 = vrot.slane %v619, 2
    %v634 = vsel %vm554, %v632, %v633
    %v635 = vrot.slane %v620, 2
    %v636 = vsel %vm554, %v633, %v635
    %637 = vrot.lane.b32.xlu0 %v629, 126
    %v638 = vpop.permute.xlu0 %637
    %639 = vrot.lane.b32.xlu0 %v631, 126
    %v640 = vpop.permute.xlu0 %639
    %641 = vrot.lane.b32.xlu0 %v634, 126
    %v642 = vpop.permute.xlu0 %641
    %643 = vrot.lane.b32.xlu0 %v636, 126
    %v644 = vpop.permute.xlu0 %643
    %v649 = vadd.f32 %v609, %v638
    %v650 = vadd.f32 %v610, %v640
    %v651 = vadd.f32 %v611, %v642
    %v652 = vadd.f32 %v612, %v644
    %s653 = sld [smem:[#allocation5 + $0x103]]
    %v654 = vstv %s653
    %v655 = vmul.f32 %v654, %v227
    %v656 = vmul.f32 %v654, %v228
    %v657 = vmul.f32 %v654, %v229
    %v658 = vmul.f32 %v654, %v230
    %v659 = vmul.f32 %v654, %v231
    %v660 = vmul.f32 %v654, %v232
    %v667 = vrot.slane %v655, 2
    %v668 = vrot.slane %v656, 2
    %v669 = vsel %vm554, %v667, %v668
    %v670 = vrot.slane %v657, 2
    %v671 = vsel %vm554, %v668, %v670
    %v672 = vrot.slane %v658, 2
    %v673 = vrot.slane %v659, 2
    %v674 = vsel %vm554, %v672, %v673
    %v675 = vrot.slane %v660, 2
    %v676 = vsel %vm554, %v673, %v675
    %677 = vrot.lane.b32.xlu0 %v669, 125
    %v678 = vpop.permute.xlu0 %677
    %679 = vrot.lane.b32.xlu0 %v671, 125
    %v680 = vpop.permute.xlu0 %679
    %681 = vrot.lane.b32.xlu0 %v674, 125
    %v682 = vpop.permute.xlu0 %681
    %683 = vrot.lane.b32.xlu0 %v676, 125
    %v684 = vpop.permute.xlu0 %683
    %v689 = vadd.f32 %v649, %v678
    %v690 = vadd.f32 %v650, %v680
    %v691 = vadd.f32 %v651, %v682
    %v692 = vadd.f32 %v652, %v684
    %s693 = sld [smem:[#allocation5 + $0x104]]
    %v694 = vstv %s693
    %v695 = vmul.f32 %v694, %v227
    %v696 = vmul.f32 %v694, %v228
    %v697 = vmul.f32 %v694, %v229
    %v698 = vmul.f32 %v694, %v230
    %v699 = vmul.f32 %v694, %v231
    %v700 = vmul.f32 %v694, %v232
    %v707 = vrot.slane %v695, 2
    %v708 = vrot.slane %v696, 2
    %v709 = vsel %vm554, %v707, %v708
    %v710 = vrot.slane %v697, 2
    %v711 = vsel %vm554, %v708, %v710
    %v712 = vrot.slane %v698, 2
    %v713 = vrot.slane %v699, 2
    %v714 = vsel %vm554, %v712, %v713
    %v715 = vrot.slane %v700, 2
    %v716 = vsel %vm554, %v713, %v715
    %717 = vrot.lane.b32.xlu0 %v709, 124
    %v718 = vpop.permute.xlu0 %717
    %719 = vrot.lane.b32.xlu0 %v711, 124
    %v720 = vpop.permute.xlu0 %719
    %721 = vrot.lane.b32.xlu0 %v714, 124
    %v722 = vpop.permute.xlu0 %721
    %723 = vrot.lane.b32.xlu0 %v716, 124
    %v724 = vpop.permute.xlu0 %723
    %v729 = vadd.f32 %v689, %v718
    %v730 = vadd.f32 %v690, %v720
    %v731 = vadd.f32 %v691, %v722
    %v732 = vadd.f32 %v692, %v724
    %s733 = sld [smem:[#allocation5 + $0x180]]
    %v734 = vstv %s733
    %v735 = vmul.f32 %v734, %v227
    %v736 = vmul.f32 %v734, %v228
    %v737 = vmul.f32 %v734, %v229
    %v738 = vmul.f32 %v734, %v230
    %v739 = vmul.f32 %v734, %v231
    %v740 = vmul.f32 %v734, %v232
    %vm747 = vcmask 1044480
    %v748 = vrot.slane %v735, 3
    %v749 = vrot.slane %v736, 3
    %v750 = vsel %vm747, %v748, %v749
    %v751 = vrot.slane %v737, 3
    %v752 = vsel %vm747, %v749, %v751
    %v753 = vrot.slane %v738, 3
    %v754 = vrot.slane %v739, 3
    %v755 = vsel %vm747, %v753, %v754
    %v756 = vrot.slane %v740, 3
    %v757 = vsel %vm747, %v754, %v756
    %v762 = vadd.f32 %v729, %v750
    %v763 = vadd.f32 %v730, %v752
    %v764 = vadd.f32 %v731, %v755
    %v765 = vadd.f32 %v732, %v757
    %s766 = sld [smem:[#allocation5 + $0x181]]
    %v767 = vstv %s766
    %v768 = vmul.f32 %v767, %v227
    %v769 = vmul.f32 %v767, %v228
    %v770 = vmul.f32 %v767, %v229
    %v771 = vmul.f32 %v767, %v230
    %v772 = vmul.f32 %v767, %v231
    %v773 = vmul.f32 %v767, %v232
    %v780 = vrot.slane %v768, 3
    %v781 = vrot.slane %v769, 3
    %v782 = vsel %vm747, %v780, %v781
    %v783 = vrot.slane %v770, 3
    %v784 = vsel %vm747, %v781, %v783
    %v785 = vrot.slane %v771, 3
    %v786 = vrot.slane %v772, 3
    %v787 = vsel %vm747, %v785, %v786
    %v788 = vrot.slane %v773, 3
    %v789 = vsel %vm747, %v786, %v788
    %790 = vrot.lane.b32.xlu0 %v782, 127
    %v791 = vpop.permute.xlu0 %790
    %792 = vrot.lane.b32.xlu0 %v784, 127
    %v793 = vpop.permute.xlu0 %792
    %794 = vrot.lane.b32.xlu0 %v787, 127
    %v795 = vpop.permute.xlu0 %794
    %796 = vrot.lane.b32.xlu0 %v789, 127
    %v797 = vpop.permute.xlu0 %796
    %v802 = vadd.f32 %v762, %v791
    %v803 = vadd.f32 %v763, %v793
    %v804 = vadd.f32 %v764, %v795
    %v805 = vadd.f32 %v765, %v797
    %s806 = sld [smem:[#allocation5 + $0x182]]
    %v807 = vstv %s806
    %v808 = vmul.f32 %v807, %v227
    %v809 = vmul.f32 %v807, %v228
    %v810 = vmul.f32 %v807, %v229
    %v811 = vmul.f32 %v807, %v230
    %v812 = vmul.f32 %v807, %v231
    %v813 = vmul.f32 %v807, %v232
    %v820 = vrot.slane %v808, 3
    %v821 = vrot.slane %v809, 3
    %v822 = vsel %vm747, %v820, %v821
    %v823 = vrot.slane %v810, 3
    %v824 = vsel %vm747, %v821, %v823
    %v825 = vrot.slane %v811, 3
    %v826 = vrot.slane %v812, 3
    %v827 = vsel %vm747, %v825, %v826
    %v828 = vrot.slane %v813, 3
    %v829 = vsel %vm747, %v826, %v828
    %830 = vrot.lane.b32.xlu0 %v822, 126
    %v831 = vpop.permute.xlu0 %830
    %832 = vrot.lane.b32.xlu0 %v824, 126
    %v833 = vpop.permute.xlu0 %832
    %834 = vrot.lane.b32.xlu0 %v827, 126
    %v835 = vpop.permute.xlu0 %834
    %836 = vrot.lane.b32.xlu0 %v829, 126
    %v837 = vpop.permute.xlu0 %836
    %v842 = vadd.f32 %v802, %v831
    %v843 = vadd.f32 %v803, %v833
    %v844 = vadd.f32 %v804, %v835
    %v845 = vadd.f32 %v805, %v837
    %s846 = sld [smem:[#allocation5 + $0x183]]
    %v847 = vstv %s846
    %v848 = vmul.f32 %v847, %v227
    %v849 = vmul.f32 %v847, %v228
    %v850 = vmul.f32 %v847, %v229
    %v851 = vmul.f32 %v847, %v230
    %v852 = vmul.f32 %v847, %v231
    %v853 = vmul.f32 %v847, %v232
    %v860 = vrot.slane %v848, 3
    %v861 = vrot.slane %v849, 3
    %v862 = vsel %vm747, %v860, %v861
    %v863 = vrot.slane %v850, 3
    %v864 = vsel %vm747, %v861, %v863
    %v865 = vrot.slane %v851, 3
    %v866 = vrot.slane %v852, 3
    %v867 = vsel %vm747, %v865, %v866
    %v868 = vrot.slane %v853, 3
    %v869 = vsel %vm747, %v866, %v868
    %870 = vrot.lane.b32.xlu0 %v862, 125
    %v871 = vpop.permute.xlu0 %870
    %872 = vrot.lane.b32.xlu0 %v864, 125
    %v873 = vpop.permute.xlu0 %872
    %874 = vrot.lane.b32.xlu0 %v867, 125
    %v875 = vpop.permute.xlu0 %874
    %876 = vrot.lane.b32.xlu0 %v869, 125
    %v877 = vpop.permute.xlu0 %876
    %v882 = vadd.f32 %v842, %v871
    %v883 = vadd.f32 %v843, %v873
    %v884 = vadd.f32 %v844, %v875
    %v885 = vadd.f32 %v845, %v877
    %s886 = sld [smem:[#allocation5 + $0x184]]
    %v887 = vstv %s886
    %v888 = vmul.f32 %v887, %v227
    %v889 = vmul.f32 %v887, %v228
    %v890 = vmul.f32 %v887, %v229
    %v891 = vmul.f32 %v887, %v230
    %v892 = vmul.f32 %v887, %v231
    %v893 = vmul.f32 %v887, %v232
    %v900 = vrot.slane %v888, 3
    %v901 = vrot.slane %v889, 3
    %v902 = vsel %vm747, %v900, %v901
    %v903 = vrot.slane %v890, 3
    %v904 = vsel %vm747, %v901, %v903
    %v905 = vrot.slane %v891, 3
    %v906 = vrot.slane %v892, 3
    %v907 = vsel %vm747, %v905, %v906
    %v908 = vrot.slane %v893, 3
    %v909 = vsel %vm747, %v906, %v908
    %910 = vrot.lane.b32.xlu0 %v902, 124
    %v911 = vpop.permute.xlu0 %910
    %912 = vrot.lane.b32.xlu0 %v904, 124
    %v913 = vpop.permute.xlu0 %912
    %914 = vrot.lane.b32.xlu0 %v907, 124
    %v915 = vpop.permute.xlu0 %914
    %916 = vrot.lane.b32.xlu0 %v909, 124
    %v917 = vpop.permute.xlu0 %916
    %v922 = vadd.f32 %v882, %v911
    %v923 = vadd.f32 %v883, %v913
    %v924 = vadd.f32 %v884, %v915
    %v925 = vadd.f32 %v885, %v917
    %s926 = sld [smem:[#allocation5 + $0x200]]
    %v927 = vstv %s926
    %v928 = vmul.f32 %v927, %v227
    %v929 = vmul.f32 %v927, %v228
    %v930 = vmul.f32 %v927, %v229
    %v931 = vmul.f32 %v927, %v230
    %v932 = vmul.f32 %v927, %v231
    %v933 = vmul.f32 %v927, %v232
    %vm940 = vcmask 1043456
    %v941 = vrot.slane %v928, 4
    %v942 = vrot.slane %v929, 4
    %v943 = vsel %vm940, %v941, %v942
    %v944 = vrot.slane %v930, 4
    %v945 = vsel %vm940, %v942, %v944
    %v946 = vrot.slane %v931, 4
    %v947 = vrot.slane %v932, 4
    %v948 = vsel %vm940, %v946, %v947
    %v949 = vrot.slane %v933, 4
    %v950 = vsel %vm940, %v947, %v949
    %v955 = vadd.f32 %v922, %v943
    %v956 = vadd.f32 %v923, %v945
    %v957 = vadd.f32 %v924, %v948
    %v958 = vadd.f32 %v925, %v950
    %s959 = sld [smem:[#allocation5 + $0x201]]
    %v960 = vstv %s959
    %v961 = vmul.f32 %v960, %v227
    %v962 = vmul.f32 %v960, %v228
    %v963 = vmul.f32 %v960, %v229
    %v964 = vmul.f32 %v960, %v230
    %v965 = vmul.f32 %v960, %v231
    %v966 = vmul.f32 %v960, %v232
    %v973 = vrot.slane %v961, 4
    %v974 = vrot.slane %v962, 4
    %v975 = vsel %vm940, %v973, %v974
    %v976 = vrot.slane %v963, 4
    %v977 = vsel %vm940, %v974, %v976
    %v978 = vrot.slane %v964, 4
    %v979 = vrot.slane %v965, 4
    %v980 = vsel %vm940, %v978, %v979
    %v981 = vrot.slane %v966, 4
    %v982 = vsel %vm940, %v979, %v981
    %983 = vrot.lane.b32.xlu0 %v975, 127
    %v984 = vpop.permute.xlu0 %983
    %985 = vrot.lane.b32.xlu0 %v977, 127
    %v986 = vpop.permute.xlu0 %985
    %987 = vrot.lane.b32.xlu0 %v980, 127
    %v988 = vpop.permute.xlu0 %987
    %989 = vrot.lane.b32.xlu0 %v982, 127
    %v990 = vpop.permute.xlu0 %989
    %v995 = vadd.f32 %v955, %v984
    %v996 = vadd.f32 %v956, %v986
    %v997 = vadd.f32 %v957, %v988
    %v998 = vadd.f32 %v958, %v990
    %s999 = sld [smem:[#allocation5 + $0x202]]
    %v1000 = vstv %s999
    %v1001 = vmul.f32 %v1000, %v227
    %v1002 = vmul.f32 %v1000, %v228
    %v1003 = vmul.f32 %v1000, %v229
    %v1004 = vmul.f32 %v1000, %v230
    %v1005 = vmul.f32 %v1000, %v231
    %v1006 = vmul.f32 %v1000, %v232
    %v1013 = vrot.slane %v1001, 4
    %v1014 = vrot.slane %v1002, 4
    %v1015 = vsel %vm940, %v1013, %v1014
    %v1016 = vrot.slane %v1003, 4
    %v1017 = vsel %vm940, %v1014, %v1016
    %v1018 = vrot.slane %v1004, 4
    %v1019 = vrot.slane %v1005, 4
    %v1020 = vsel %vm940, %v1018, %v1019
    %v1021 = vrot.slane %v1006, 4
    %v1022 = vsel %vm940, %v1019, %v1021
    %1023 = vrot.lane.b32.xlu0 %v1015, 126
    %v1024 = vpop.permute.xlu0 %1023
    %1025 = vrot.lane.b32.xlu0 %v1017, 126
    %v1026 = vpop.permute.xlu0 %1025
    %1027 = vrot.lane.b32.xlu0 %v1020, 126
    %v1028 = vpop.permute.xlu0 %1027
    %1029 = vrot.lane.b32.xlu0 %v1022, 126
    %v1030 = vpop.permute.xlu0 %1029
    %v1035 = vadd.f32 %v995, %v1024
    %v1036 = vadd.f32 %v996, %v1026
    %v1037 = vadd.f32 %v997, %v1028
    %v1038 = vadd.f32 %v998, %v1030
    %s1039 = sld [smem:[#allocation5 + $0x203]]
    %v1040 = vstv %s1039
    %v1041 = vmul.f32 %v1040, %v227
    %v1042 = vmul.f32 %v1040, %v228
    %v1043 = vmul.f32 %v1040, %v229
    %v1044 = vmul.f32 %v1040, %v230
    %v1045 = vmul.f32 %v1040, %v231
    %v1046 = vmul.f32 %v1040, %v232
    %v1053 = vrot.slane %v1041, 4
    %v1054 = vrot.slane %v1042, 4
    %v1055 = vsel %vm940, %v1053, %v1054
    %v1056 = vrot.slane %v1043, 4
    %v1057 = vsel %vm940, %v1054, %v1056
    %v1058 = vrot.slane %v1044, 4
    %v1059 = vrot.slane %v1045, 4
    %v1060 = vsel %vm940, %v1058, %v1059
    %v1061 = vrot.slane %v1046, 4
    %v1062 = vsel %vm940, %v1059, %v1061
    %1063 = vrot.lane.b32.xlu0 %v1055, 125
    %v1064 = vpop.permute.xlu0 %1063
    %1065 = vrot.lane.b32.xlu0 %v1057, 125
    %v1066 = vpop.permute.xlu0 %1065
    %1067 = vrot.lane.b32.xlu0 %v1060, 125
    %v1068 = vpop.permute.xlu0 %1067
    %1069 = vrot.lane.b32.xlu0 %v1062, 125
    %v1070 = vpop.permute.xlu0 %1069
    %v1075 = vadd.f32 %v1035, %v1064
    %v1076 = vadd.f32 %v1036, %v1066
    %v1077 = vadd.f32 %v1037, %v1068
    %v1078 = vadd.f32 %v1038, %v1070
    %s1079 = sld [smem:[#allocation5 + $0x204]]
    %v1080 = vstv %s1079
    %v1081 = vmul.f32 %v1080, %v227
    %v1082 = vmul.f32 %v1080, %v228
    %v1083 = vmul.f32 %v1080, %v229
    %v1084 = vmul.f32 %v1080, %v230
    %v1085 = vmul.f32 %v1080, %v231
    %v1086 = vmul.f32 %v1080, %v232
    %v1093 = vrot.slane %v1081, 4
    %v1094 = vrot.slane %v1082, 4
    %v1095 = vsel %vm940, %v1093, %v1094
    %v1096 = vrot.slane %v1083, 4
    %v1097 = vsel %vm940, %v1094, %v1096
    %v1098 = vrot.slane %v1084, 4
    %v1099 = vrot.slane %v1085, 4
    %v1100 = vsel %vm940, %v1098, %v1099
    %v1101 = vrot.slane %v1086, 4
    %v1102 = vsel %vm940, %v1099, %v1101
    %1103 = vrot.lane.b32.xlu0 %v1095, 124
    %v1104 = vpop.permute.xlu0 %1103
    %1105 = vrot.lane.b32.xlu0 %v1097, 124
    %v1106 = vpop.permute.xlu0 %1105
    %1107 = vrot.lane.b32.xlu0 %v1100, 124
    %v1108 = vpop.permute.xlu0 %1107
    %1109 = vrot.lane.b32.xlu0 %v1102, 124
    %v1110 = vpop.permute.xlu0 %1109
    %v1115 = vadd.f32 %v1075, %v1104
    %v1116 = vadd.f32 %v1076, %v1106
    %v1117 = vadd.f32 %v1077, %v1108
    %v1118 = vadd.f32 %v1078, %v1110
    %v1119 = vxor.u32 %v1115, 2147483648
    %v1120 = vxor.u32 %v1116, 2147483648
    %v1121 = vxor.u32 %v1117, 2147483648
    %v1122 = vxor.u32 %v1118, 2147483648
    %v1123 = vmul.f32 %v1119, 1.442695
    %v1124 = vpow.pop %v1123
    %v1125 = vmul.f32 %v1120, 1.442695
    %v1126 = vpow.pop %v1125
    %v1127 = vmul.f32 %v1121, 1.442695
    %v1128 = vpow.pop %v1127
    %v1129 = vmul.f32 %v1122, 1.442695
    %v1130 = vpow.pop %v1129
    %v1131 = vadd.f32 %v1124, 1.0
    %v1132 = vadd.f32 %v1126, 1.0
    %v1133 = vadd.f32 %v1128, 1.0
    %v1134 = vadd.f32 %v1130, 1.0
    %v1135 = vrcp.pop %v1131
    %v1136 = vmul.f32 1.0, %v1135
    %v1137 = vrcp.pop %v1132
    %v1138 = vmul.f32 1.0, %v1137
    %v1139 = vrcp.pop %v1133
    %v1140 = vmul.f32 1.0, %v1139
    %v1141 = vrcp.pop %v1134
    %v1142 = vmul.f32 1.0, %v1141
    %vm1143 = vcmask 130048
    %1144 = vst.msk [vmem:[#allocation7] sm:$0xff] %vm1143, %v1136
    %1145 = vst.msk [vmem:[#allocation7 + $0x8] sm:$0xff] %vm1143, %v1138
    %1146 = vst.msk [vmem:[#allocation7 + $0x10] sm:$0xff] %vm1143, %v1140
    %1147 = vst.msk [vmem:[#allocation7 + $0x18] sm:$0xff] %vm1143, %v1142
    // Predicated region
    $region22: #{motion_strength.1} parent=1 // pred_check
      _
    $region23: #{motion_strength.1} parent=1 // pred_check_branch
      %1149 = sbr.rel (0) target = $region25
    $region24: #{motion_strength.1} parent=1 // pred_region
      %s1151 = ssub.s32 512, 512
      %1152 = vsyncadd [#allocation3], %s1151
      %s1153 = sshll.u32 [#allocation7], 4
      %s1154 = int_to_ptr.vmem [resolvable:$true] %s1153
      %1159 = dma.vmem_to_hbm [thread:$0]  %s1154, 512, %s3, [#allocation3], 128, 128, 8
    $region25: #{motion_strength.1} parent=1 // pred_fallthru
      _
    // Predicated region
    $region26: #{motion_strength.1} parent=1 // pred_check
      _
    $region27: #{motion_strength.1} parent=1 // pred_check_branch
      %1161 = sbr.rel (0) target = $region29
    $region28: #{motion_strength.1} parent=1 // pred_region
      %1162 = dma.done [#allocation3], 512
    $region29: #{motion_strength.1} parent=1 // pred_fallthru
      _
    %1163 = vsyncpa [#allocation3], 1
    %1164 = vsyncpa [#allocation4], 1
    %1165 = vsyncpa [#allocation6], 1

</llo_original>
